<compile_context>
chip_gen: v5e
topology: v5e:2x2
jax: 0.10.0
libtpu: 0.0.40
codegen_flags: <defaults>
</compile_context>

<pallas_src>
import functools

import jax
import jax.numpy as jnp
from jax.experimental import pallas as pl
from jax.experimental.pallas import tpu as pltpu


_MAX_BLOCK_ROWS = 2048  # 2048 x 128 x 4 B = 1 MiB per f32 block.


def _rational_kernel(p_ref, q_ref, x_ref, o_ref, *, num_p, num_q):
    """P(x) / (1 + x*q(x)) on one (block_rows, 128) float32 tile.

    p_ref, q_ref : whole coefficient vectors resident in SMEM.
    x_ref, o_ref : VMEM tiles.
    """
    x = x_ref[...]

    # Numerator P(x) via Horner's scheme (statically unrolled).
    if num_p == 1:
        num = jnp.full_like(x, p_ref[0])
    else:
        num = x * p_ref[num_p - 1] + p_ref[num_p - 2]
        for i in range(num_p - 3, -1, -1):
            num = num * x + p_ref[i]

    # q(x) via Horner; denominator = 1 + x*q(x) folded as one mul+add.
    if num_q == 1:
        qpoly = jnp.full_like(x, q_ref[0])
    else:
        qpoly = x * q_ref[num_q - 1] + q_ref[num_q - 2]
        for i in range(num_q - 3, -1, -1):
            qpoly = qpoly * x + q_ref[i]
    den = x * qpoly + 1.0

    # EUP approximate reciprocal + one Newton refinement step (rel err ~1e-7,
    # far inside the 1e-5 tolerance).
    inv = pl.reciprocal(den, approx=True)
    inv = inv * (2.0 - den * inv)

    o_ref[...] = num * inv


@jax.jit
def polynomial_rational_forward(x_eval, p, q):
    """Pallas forward of PolynomialRationalModel.

    x_eval : (N,) float32 evaluation points
    p      : (numerator_degree + 1,) float32
    q      : (denominator_degree,)   float32
    returns: (N,) float32
    """
    x_eval = jnp.asarray(x_eval, jnp.float32)
    p = jnp.asarray(p, jnp.float32)
    q = jnp.asarray(q, jnp.float32)
    if q.shape[0] == 0:
        # denominator_degree == 0 -> q(x) = 0 -> den = 1.
        q = jnp.zeros((1,), jnp.float32)

    n = x_eval.shape[0]
    rows = (n + 127) // 128
    n_pad = rows * 128

    # Lane-dense (rows, 128) view.  When N % 128 == 0 this is a free reshape
    # (no pad pass, no output-slice pass); otherwise only the <=127-element
    # tail is padded.
    if n_pad != n:
        x_flat = jnp.pad(x_eval, (0, n_pad - n))
    else:
        x_flat = x_eval
    x2d = x_flat.reshape(rows, 128)

    # 1 MiB blocks; a ragged last block (rows % block_rows != 0) is masked by
    # Pallas, so no row padding is ever needed.
    block_rows = min(_MAX_BLOCK_ROWS, rows)
    grid = (pl.cdiv(rows, block_rows),)

    kernel = functools.partial(
        _rational_kernel, num_p=int(p.shape[0]), num_q=int(q.shape[0])
    )

    out2d = pl.pallas_call(
        kernel,
        out_shape=jax.ShapeDtypeStruct((rows, 128), jnp.float32),
        grid=grid,
        in_specs=[
            pl.BlockSpec(memory_space=pltpu.MemorySpace.SMEM),   # p coeffs
            pl.BlockSpec(memory_space=pltpu.MemorySpace.SMEM),   # q coeffs
            pl.BlockSpec((block_rows, 128), lambda i: (i, 0)),   # x tile
        ],
        out_specs=pl.BlockSpec((block_rows, 128), lambda i: (i, 0)),
        compiler_params=pltpu.CompilerParams(
            dimension_semantics=("parallel",),
        ),
    )(p, q, x2d)

    out = out2d.reshape(-1)
    if n_pad != n:
        out = out[:n]
    return out


def _reference_forward(x_eval, p, q):
    """Plain-JAX reference matching the PyTorch forward exactly."""
    num = jnp.zeros_like(x_eval)
    for i in range(p.shape[0]):
        num = num + p[i] * x_eval ** i
    qpoly = jnp.zeros_like(x_eval)
    for i in range(q.shape[0]):
        qpoly = qpoly + q[i] * x_eval ** i
    den = 1.0 + x_eval * qpoly
    return num / den


if __name__ == "__main__":
    # Module config (num_points only builds self.nodes, unused by forward).
    num_points = 16
    numerator_degree = 4
    denominator_degree = 3

    key = jax.random.PRNGKey(0)
    kp, kq = jax.random.split(key)
    # The module initialises p/q to zeros (forward would be trivially zero);
    # use small deterministic random coefficients instead.
    p = 0.5 * jax.random.normal(kp, (numerator_degree + 1,), jnp.float32)
    q = 0.1 * jax.random.normal(kq, (denominator_degree,), jnp.float32)

    # Matches x_eval = torch.linspace(-1, 1, 1000).
    x_eval = jnp.linspace(-1.0, 1.0, 1000, dtype=jnp.float32)

    out = jax.block_until_ready(polynomial_rational_forward(x_eval, p, q))

    ref = _reference_forward(x_eval, p, q)
    assert out.shape == (1000,)
    assert jnp.allclose(out, ref, atol=1e-5, rtol=1e-5)

    print("KERNEL_OK")
</pallas_src>

<mosaic_0001>
module attributes {stable_mosaic.version = 11 : i64} {
  func.func @_rational_kernel(%arg0: i32, %arg1: memref<5xf32, #tpu.memory_space<smem>>, %arg2: memref<3xf32, #tpu.memory_space<smem>>, %arg3: memref<8x128xf32, #tpu.memory_space<vmem>>, %arg4: memref<8x128xf32, #tpu.memory_space<vmem>>) attributes {dimension_semantics = [#tpu.dimension_semantics<parallel>], iteration_bounds = array<i64: 1>, scalar_prefetch = 0 : i64, scratch_operands = 0 : i64, tpu.core_type = #tpu.core_type<tc>, window_params = [{transform_indices = @transform_0, window_bounds = array<i64: 5>}, {transform_indices = @transform_1, window_bounds = array<i64: 3>}, {transform_indices = @transform_2, window_bounds = array<i64: 8, 128>}, {transform_indices = @transform_3, window_bounds = array<i64: 8, 128>}]} {
    %c0 = arith.constant 0 : index
    %c0_0 = arith.constant 0 : index
    %0 = vector.load %arg3[%c0, %c0_0] : memref<8x128xf32, #tpu.memory_space<vmem>>, vector<8x128xf32>
    %c4 = arith.constant 4 : index
    %1 = memref.load %arg1[%c4] : memref<5xf32, #tpu.memory_space<smem>>
    %2 = vector.broadcast %1 : f32 to vector<8x128xf32>
    %3 = arith.mulf %0, %2 : vector<8x128xf32>
    %c3 = arith.constant 3 : index
    %4 = memref.load %arg1[%c3] : memref<5xf32, #tpu.memory_space<smem>>
    %5 = vector.broadcast %4 : f32 to vector<8x128xf32>
    %6 = arith.addf %3, %5 : vector<8x128xf32>
    %7 = arith.mulf %6, %0 : vector<8x128xf32>
    %c2 = arith.constant 2 : index
    %8 = memref.load %arg1[%c2] : memref<5xf32, #tpu.memory_space<smem>>
    %9 = vector.broadcast %8 : f32 to vector<8x128xf32>
    %10 = arith.addf %7, %9 : vector<8x128xf32>
    %11 = arith.mulf %10, %0 : vector<8x128xf32>
    %c1 = arith.constant 1 : index
    %12 = memref.load %arg1[%c1] : memref<5xf32, #tpu.memory_space<smem>>
    %13 = vector.broadcast %12 : f32 to vector<8x128xf32>
    %14 = arith.addf %11, %13 : vector<8x128xf32>
    %15 = arith.mulf %14, %0 : vector<8x128xf32>
    %c0_1 = arith.constant 0 : index
    %16 = memref.load %arg1[%c0_1] : memref<5xf32, #tpu.memory_space<smem>>
    %17 = vector.broadcast %16 : f32 to vector<8x128xf32>
    %18 = arith.addf %15, %17 : vector<8x128xf32>
    %c2_2 = arith.constant 2 : index
    %19 = memref.load %arg2[%c2_2] : memref<3xf32, #tpu.memory_space<smem>>
    %20 = vector.broadcast %19 : f32 to vector<8x128xf32>
    %21 = arith.mulf %0, %20 : vector<8x128xf32>
    %c1_3 = arith.constant 1 : index
    %22 = memref.load %arg2[%c1_3] : memref<3xf32, #tpu.memory_space<smem>>
    %23 = vector.broadcast %22 : f32 to vector<8x128xf32>
    %24 = arith.addf %21, %23 : vector<8x128xf32>
    %25 = arith.mulf %24, %0 : vector<8x128xf32>
    %c0_4 = arith.constant 0 : index
    %26 = memref.load %arg2[%c0_4] : memref<3xf32, #tpu.memory_space<smem>>
    %27 = vector.broadcast %26 : f32 to vector<8x128xf32>
    %28 = arith.addf %25, %27 : vector<8x128xf32>
    %29 = arith.mulf %0, %28 : vector<8x128xf32>
    %cst = arith.constant 1.000000e+00 : f32
    %30 = vector.broadcast %cst : f32 to vector<8x128xf32>
    %31 = arith.addf %29, %30 : vector<8x128xf32>
    %32 = tpu.reciprocal %31 {approx = true} : vector<8x128xf32> -> vector<8x128xf32>
    %33 = arith.mulf %31, %32 : vector<8x128xf32>
    %cst_5 = arith.constant 2.000000e+00 : f32
    %34 = vector.broadcast %cst_5 : f32 to vector<8x128xf32>
    %35 = arith.subf %34, %33 : vector<8x128xf32>
    %36 = arith.mulf %32, %35 : vector<8x128xf32>
    %37 = arith.mulf %18, %36 : vector<8x128xf32>
    %c0_6 = arith.constant 0 : index
    %c0_7 = arith.constant 0 : index
    %38 = vector.load %arg4[%c0_6, %c0_7] : memref<8x128xf32, #tpu.memory_space<vmem>>, vector<8x128xf32>
    tpu.vector_store %arg4[%c0_6, %c0_7], %37 {strides = array<i32>} : memref<8x128xf32, #tpu.memory_space<vmem>>, vector<8x128xf32>,
    return
  }
  func.func @transform_0(%arg0: i32) -> i32 {
    %c0_i32 = arith.constant 0 : i32
    %c0_i32_0 = arith.constant 0 : i32
    return %c0_i32 : i32
  }
  func.func @transform_1(%arg0: i32) -> i32 {
    %c0_i32 = arith.constant 0 : i32
    %c0_i32_0 = arith.constant 0 : i32
    return %c0_i32 : i32
  }
  func.func @transform_2(%arg0: i32) -> (i32, i32) {
    %c0_i32 = arith.constant 0 : i32
    %c0_i32_0 = arith.constant 0 : i32
    return %arg0, %c0_i32 : i32, i32
  }
  func.func @transform_3(%arg0: i32) -> (i32, i32) {
    %c0_i32 = arith.constant 0 : i32
    %c0_i32_0 = arith.constant 0 : i32
    return %arg0, %c0_i32 : i32, i32
  }
}

</mosaic_0001>

<llo_original>
// kernel: polynomial_rational_forward.1
$region0: #{polynomial_rational_forward.1}
  #allocation0 [shape = 'u32[]', space=smem, size = 0x4, offset = 0x4, fixed_abs, tag = 'smem constant byte address 0x4 - core index']
  #allocation1 [shape = 'u32[72,128]{1,0:T(1,128)}', space=vmem, size = 0x9000, scoped, tag = 'internal scratch']
  %s0 = inlined_call_operand.vmem [shape: f32[5], index: 0, kind: input, shape index: {}]
  %s1 = inlined_call_operand.vmem [shape: f32[3], index: 1, kind: input, shape index: {}]
  %s2 = inlined_call_operand.vmem [shape: f32[8,128], index: 2, kind: input, shape index: {}]
  %s3 = inlined_call_operand.hbm [shape: f32[8,128], index: 3, kind: output, shape index: {}]
  %s4 = sld [smem:[#allocation0]]
  $region30: #{polynomial_rational_forward.1} parent=0
    _
  %s6 = ssub.s32 1, %s4
  %s7 = scalar_select 0, %s6, %s4
  $region1: #{polynomial_rational_forward.1} parent=0
    #allocation2 [shape = 'u8[512]{0}', space=smem, size = 0x200, scoped, tag = 'input window, operand 0, single buffered']
    #allocation3 [shape = 's32[1]{0}', space=sflag, size = 0x4, scoped, tag = 'scoped memory for polynomial_rational_forward.1']
    #allocation4 [shape = 's32[1]{0}', space=sflag, size = 0x4, scoped, tag = 'scoped memory for polynomial_rational_forward.1']
    #allocation5 [shape = 'u8[512]{0}', space=smem, size = 0x200, scoped, tag = 'input window, operand 1, single buffered']
    #allocation6 [shape = 's32[1]{0}', space=sflag, size = 0x4, scoped, tag = 'scoped memory for polynomial_rational_forward.1']
    #allocation7 [shape = 'u8[4096]{0}', space=vmem, size = 0x1000, scoped, tag = 'output window, operand 0, single buffered']
    %8 = vsyncpa [#allocation4], 0
    %9 = vsyncpa [#allocation6], 0
    %10 = vsyncpa [#allocation3], 0
    // Predicated region
    $region2: #{polynomial_rational_forward.1} parent=1 // pred_check
      _
    $region3: #{polynomial_rational_forward.1} parent=1 // pred_check_branch
      %12 = sbr.rel (0) target = $region5
    $region4: #{polynomial_rational_forward.1} parent=1 // pred_region
      %14 = vsyncadd [#allocation4], 0
      %s16 = sshll.u32 %s0, 4
      %s17 = int_to_ptr.vmem [resolvable:$true] %s16
      %19 = dma.vmem_to_smem %s17, 16, [#allocation2], [#allocation4]
    $region5: #{polynomial_rational_forward.1} parent=1 // pred_fallthru
      _
    // Predicated region
    $region6: #{polynomial_rational_forward.1} parent=1 // pred_check
      _
    $region7: #{polynomial_rational_forward.1} parent=1 // pred_check_branch
      %21 = sbr.rel (0) target = $region9
    $region8: #{polynomial_rational_forward.1} parent=1 // pred_region
      %23 = vsyncadd [#allocation6], 0
      %s25 = sshll.u32 %s1, 4
      %s26 = int_to_ptr.vmem [resolvable:$true] %s25
      %28 = dma.vmem_to_smem %s26, 16, [#allocation5], [#allocation6]
    $region9: #{polynomial_rational_forward.1} parent=1 // pred_fallthru
      _
    // Predicated region
    $region10: #{polynomial_rational_forward.1} parent=1 // pred_check
      _
    $region11: #{polynomial_rational_forward.1} parent=1 // pred_check_branch
      %30 = sbr.rel (0) target = $region13
    $region12: #{polynomial_rational_forward.1} parent=1 // pred_region
      _
    $region13: #{polynomial_rational_forward.1} parent=1 // pred_fallthru
      _
    // Predicated region
    $region14: #{polynomial_rational_forward.1} parent=1 // pred_check
      _
    $region15: #{polynomial_rational_forward.1} parent=1 // pred_check_branch
      %32 = sbr.rel (0) target = $region17
    $region16: #{polynomial_rational_forward.1} parent=1 // pred_region
      %34 = dma.done [#allocation4], 16
    $region17: #{polynomial_rational_forward.1} parent=1 // pred_fallthru
      _
    // Predicated region
    $region18: #{polynomial_rational_forward.1} parent=1 // pred_check
      _
    $region19: #{polynomial_rational_forward.1} parent=1 // pred_check_branch
      %36 = sbr.rel (0) target = $region21
    $region20: #{polynomial_rational_forward.1} parent=1 // pred_region
      %38 = dma.done [#allocation6], 16
    $region21: #{polynomial_rational_forward.1} parent=1 // pred_fallthru
      _
    %39 = sfence
    %v40 = vld [vmem:[%s2] sm:$0xff]
    %s41 = sld [smem:[#allocation2 + $0x4]]
    %v42 = vstv %s41
    %v43 = vmul.f32 %v40, %v42
    %s44 = sld [smem:[#allocation2 + $0x3]]
    %v45 = vstv %s44
    %v46 = vadd.f32 %v43, %v45
    %v47 = vmul.f32 %v46, %v40
    %s48 = sld [smem:[#allocation2 + $0x2]]
    %v49 = vstv %s48
    %v50 = vadd.f32 %v47, %v49
    %v51 = vmul.f32 %v50, %v40
    %s52 = sld [smem:[#allocation2 + $0x1]]
    %v53 = vstv %s52
    %v54 = vadd.f32 %v51, %v53
    %v55 = vmul.f32 %v54, %v40
    %s56 = sld [smem:[#allocation2]]
    %v57 = vstv %s56
    %v58 = vadd.f32 %v55, %v57
    %s59 = sld [smem:[#allocation5 + $0x2]]
    %v60 = vstv %s59
    %v61 = vmul.f32 %v40, %v60
    %s62 = sld [smem:[#allocation5 + $0x1]]
    %v63 = vstv %s62
    %v64 = vadd.f32 %v61, %v63
    %v65 = vmul.f32 %v64, %v40
    %s66 = sld [smem:[#allocation5]]
    %v67 = vstv %s66
    %v68 = vadd.f32 %v65, %v67
    %v69 = vmul.f32 %v40, %v68
    %v70 = vadd.f32 %v69, 1.0
    %v71 = vrcp.pop %v70
    %v72 = vmul.f32 %v70, %v71
    %v73 = vsub.f32 2.0, %v72
    %v74 = vmul.f32 %v71, %v73
    %v75 = vmul.f32 %v58, %v74
    %76 = vst [vmem:[#allocation7] sm:$0xff] %v75
    // Predicated region
    $region22: #{polynomial_rational_forward.1} parent=1 // pred_check
      _
    $region23: #{polynomial_rational_forward.1} parent=1 // pred_check_branch
      %78 = sbr.rel (0) target = $region25
    $region24: #{polynomial_rational_forward.1} parent=1 // pred_region
      %80 = vsyncadd [#allocation3], 0
      %s82 = sshll.u32 [#allocation7], 4
      %s83 = int_to_ptr.vmem [resolvable:$true] %s82
      %s84 = sshll.u32 %s3, 4
      %s85 = int_to_ptr.hbm [resolvable:$true] %s84
      %87 = dma.vmem_to_hbm [thread:$0]  %s83, 128, %s85, [#allocation3]
    $region25: #{polynomial_rational_forward.1} parent=1 // pred_fallthru
      _
    // Predicated region
    $region26: #{polynomial_rational_forward.1} parent=1 // pred_check
      _
    $region27: #{polynomial_rational_forward.1} parent=1 // pred_check_branch
      %89 = sbr.rel (0) target = $region29
    $region28: #{polynomial_rational_forward.1} parent=1 // pred_region
      %91 = dma.done [#allocation3], 128
    $region29: #{polynomial_rational_forward.1} parent=1 // pred_fallthru
      _
    %92 = vsyncpa [#allocation3], 1
    %93 = vsyncpa [#allocation4], 1
    %94 = vsyncpa [#allocation6], 1

</llo_original>
